<compile_context>
chip_gen: v5e
topology: v5e:2x2
jax: 0.10.0
libtpu: 0.0.40
codegen_flags: <defaults>
</compile_context>

<pallas_src>
import functools

import jax
import jax.numpy as jnp
from jax.experimental import pallas as pl
from jax.experimental.pallas import tpu as pltpu

_DEFAULT_TILE_B = 1024


def _cdiv(a, b):
    return -(-a // b)


def _round_up(x, m):
    return ((x + m - 1) // m) * m


def _vmem_capacity_bytes():
    """Physical VMEM of the local chip; conservative v7x-safe fallback."""
    try:
        cap = getattr(pltpu.get_tpu_info(), "vmem_capacity_bytes", None)
        if cap:
            return int(cap)
    except Exception:
        pass
    return 64 * 1024 * 1024  # v7x has the smallest VMEM (64 MiB)


def _select_tiling(B, n_inp, n_out, requested_tile_b, in_itemsize):
    """Pick a sublane-aligned batch tile that fits VMEM and feeds 2 TCs."""
    sub = max(8, 32 // in_itemsize)          # sublane granule: 8 f32 / 16 bf16
    cap = _vmem_capacity_bytes()
    budget = int(0.6 * cap)                  # leave headroom for compiler scratch

    t = _DEFAULT_TILE_B if requested_tile_b is None else int(requested_tile_b)
    t = _round_up(max(sub, min(t, _round_up(B, sub))), sub)

    def need(tb):
        return (2 * tb * n_inp * in_itemsize       # x tile (double-buffered)
                + 2 * tb * n_out * 4               # f32 out tile (double-buffered)
                + 2 * n_inp * n_out * in_itemsize  # resident weights (2 buffers)
                + 2 * n_out * 4)                   # bias

    while t > sub and need(t) > budget:
        t = _round_up(t // 2, sub)

    # v7x megacore: prefer >= 2 grid steps so the second TensorCore isn't idle.
    if _cdiv(B, t) < 2 and B > sub:
        t = _round_up(_cdiv(B, 2), sub)

    vmem_limit = max(32 * 1024 * 1024, min(need(t) + (8 << 20), int(0.75 * cap)))
    return t, vmem_limit


def _diag_gaussian_mean_kernel(x_ref, w_ref, b_ref, mean_ref):
    # One (tile_b, n_out) tile of: mean = x @ W_t + b  (MXU matmul, f32 acc, VPU add).
    mean = jnp.dot(x_ref[...], w_ref[...], preferred_element_type=jnp.float32)
    mean_ref[...] = (mean + b_ref[...]).astype(mean_ref.dtype)


@functools.partial(jax.jit, static_argnames=("tile_b", "input_dtype"))
def diag_gaussian_forward(x, w_t, bias, logstd, *, tile_b=None, input_dtype=None):
    """Forward pass of DiagGaussian.

    x:      (B, n_inp)                      activations
    w_t:    (n_inp, n_out)                  fc_mean.weight transposed
    bias:   (1, n_out)                      fc_mean.bias
    logstd: (1, n_out)                      AddBias parameter (init zeros)
    input_dtype: optional dtype (e.g. jnp.bfloat16) for the matmul operands;
                 accumulation / bias / output stay float32.

    Returns (mean, std):
      mean: (B, n_out) float32
      std:  (1, n_out) float32 -- broadcasts in the FixedNormal helpers,
            identical distribution to the PyTorch module's (B, n_out) scale.
    """
    B, n_inp = x.shape
    n_out = w_t.shape[1]

    in_dtype = jnp.dtype(x.dtype) if input_dtype is None else jnp.dtype(input_dtype)
    itemsize = in_dtype.itemsize

    tile_b_sel, vmem_limit = _select_tiling(B, n_inp, n_out, tile_b, itemsize)

    # In production x / w_t should already be stored in `in_dtype`; the casts
    # here are no-ops for the default f32 path.
    x_in = x.astype(in_dtype)
    w_in = w_t.astype(in_dtype)
    b_in = bias.astype(jnp.float32)

    grid = (_cdiv(B, tile_b_sel),)

    mean = pl.pallas_call(
        _diag_gaussian_mean_kernel,
        out_shape=jax.ShapeDtypeStruct((B, n_out), jnp.float32),
        grid_spec=pltpu.PrefetchScalarGridSpec(
            num_scalar_prefetch=0,
            grid=grid,
            in_specs=[
                pl.BlockSpec((tile_b_sel, n_inp), lambda i: (i, 0)),  # x batch tile
                pl.BlockSpec((n_inp, n_out), lambda i: (0, 0)),       # weights (resident)
                pl.BlockSpec((1, n_out), lambda i: (0, 0)),           # bias (resident)
            ],
            out_specs=pl.BlockSpec((tile_b_sel, n_out), lambda i: (i, 0)),
        ),
        compiler_params=pltpu.CompilerParams(
            dimension_semantics=("parallel",),   # 2 TCs on v7x; no-op on v5e/v6e
            vmem_limit_bytes=vmem_limit,
        ),
        cost_estimate=pl.CostEstimate(
            flops=2 * B * n_inp * n_out,
            transcendentals=0,
            bytes_accessed=(B * n_inp * itemsize + n_inp * n_out * itemsize
                            + n_out * 4 + B * n_out * 4),
        ),
    )(x_in, w_in, b_in)

    # action_logstd = AddBias(zeros) -> logstd row; std is x-independent, so it
    # is never materialized as a (B, n_out) broadcast.
    std = jnp.exp(logstd)                       # (1, n_out)
    return mean, std


# ----- plain-JAX FixedNormal equivalents (distribution methods, not hot path) -----
def fixed_normal_log_probs(mean, std, actions):
    var = std * std
    log_scale = jnp.log(std)
    lp = -((actions - mean) ** 2) / (2.0 * var) - log_scale - 0.5 * jnp.log(2.0 * jnp.pi)
    return lp.sum(-1)


def fixed_normal_entropy(mean, std):
    ent = 0.5 + 0.5 * jnp.log(2.0 * jnp.pi) + jnp.log(std)
    return jnp.broadcast_to(ent, mean.shape).sum(-1)


def fixed_normal_mode(mean, std):
    return mean


def _orthogonal_init(key, n_out, n_inp):
    # Deterministic stand-in for nn.init.orthogonal_ on a (n_out, n_inp) weight.
    a = jax.random.normal(key, (max(n_out, n_inp), min(n_out, n_inp)), jnp.float32)
    q, r = jnp.linalg.qr(a)
    q = q * jnp.sign(jnp.diag(r))[None, :]
    if n_out < n_inp:
        q = q.T
    return q[:n_out, :n_inp]


if __name__ == "__main__":
    key = jax.random.PRNGKey(0)
    k_x, k_w, k_x2, k_w2 = jax.random.split(key, 4)

    # ---- toy shapes implied by the PyTorch module (f32 parity path) ----
    B, n_inp, n_out = 8, 32, 8
    x = jax.random.normal(k_x, (B, n_inp), jnp.float32)
    w = _orthogonal_init(k_w, n_out, n_inp)          # like nn.Linear.weight (n_out, n_inp)
    w_t = w.T                                        # (n_inp, n_out) for the kernel
    bias = jnp.zeros((1, n_out), jnp.float32)        # fc_mean.bias (init 0)
    logstd = jnp.zeros((1, n_out), jnp.float32)      # AddBias parameter (init 0)

    mean, std = diag_gaussian_forward(x, w_t, bias, logstd)
    jax.block_until_ready((mean, std))

    mean_ref = jnp.dot(x, w_t, precision=jax.lax.Precision.HIGHEST) + bias
    std_ref = jnp.exp(logstd)
    assert mean.shape == (B, n_out), f"bad mean shape {mean.shape}"
    assert std.shape == (1, n_out), f"bad std shape {std.shape}"
    assert jnp.allclose(mean, mean_ref, atol=1e-4), "f32 mean mismatch"
    assert jnp.allclose(std, std_ref, atol=1e-6), "std mismatch"

    # Distribution helpers (mode == mean); the (1, n_out) std broadcasts for free.
    lp = fixed_normal_log_probs(mean, std, fixed_normal_mode(mean, std))
    ent = fixed_normal_entropy(mean, std)
    assert lp.shape == (B,) and ent.shape == (B,)

    # ---- ragged batch: exercises the cdiv grid / partial edge block, no pad copy ----
    B2, n_inp2, n_out2 = 200, 128, 8
    x2 = jax.random.normal(k_x2, (B2, n_inp2), jnp.float32)
    w2_t = _orthogonal_init(k_w2, n_out2, n_inp2).T
    bias2 = jnp.zeros((1, n_out2), jnp.float32)
    logstd2 = jnp.zeros((1, n_out2), jnp.float32)

    mean2, std2 = diag_gaussian_forward(x2, w2_t, bias2, logstd2)
    jax.block_until_ready(mean2)
    mean2_ref = jnp.dot(x2, w2_t, precision=jax.lax.Precision.HIGHEST) + bias2
    assert mean2.shape == (B2, n_out2)
    assert jnp.allclose(mean2, mean2_ref, atol=1e-4), "ragged-batch mean mismatch"

    # ---- bf16 input path (halves HBM read traffic; f32 accumulate + f32 bias) ----
    mean_bf, _ = diag_gaussian_forward(x2, w2_t, bias2, logstd2,
                                       input_dtype=jnp.bfloat16)
    jax.block_until_ready(mean_bf)
    mean_bf_ref = jnp.dot(x2.astype(jnp.bfloat16).astype(jnp.float32),
                          w2_t.astype(jnp.bfloat16).astype(jnp.float32),
                          precision=jax.lax.Precision.HIGHEST) + bias2
    assert jnp.allclose(mean_bf, mean_bf_ref, atol=1e-3), "bf16 mean mismatch"

    print("KERNEL_OK")
</pallas_src>

<mosaic_0001>
module attributes {stable_mosaic.version = 11 : i64} {
  func.func @_diag_gaussian_mean_kernel(%arg0: i32, %arg1: memref<8x32xf32, #tpu.memory_space<vmem>>, %arg2: memref<32x8xf32, #tpu.memory_space<vmem>>, %arg3: memref<1x8xf32, #tpu.memory_space<vmem>>, %arg4: memref<8x8xf32, #tpu.memory_space<vmem>>) attributes {dimension_semantics = [#tpu.dimension_semantics<parallel>], iteration_bounds = array<i64: 1>, scalar_prefetch = 0 : i64, scratch_operands = 0 : i64, tpu.core_type = #tpu.core_type<tc>, window_params = [{transform_indices = @transform_0, window_bounds = array<i64: 8, 32>}, {pipeline_mode = #tpu.pipeline_mode<synchronous>, transform_indices = @transform_1, window_bounds = array<i64: 32, 8>}, {pipeline_mode = #tpu.pipeline_mode<synchronous>, transform_indices = @transform_2, window_bounds = array<i64: 1, 8>}, {transform_indices = @transform_3, window_bounds = array<i64: 8, 8>}]} {
    %c0 = arith.constant 0 : index
    %c0_0 = arith.constant 0 : index
    %0 = vector.load %arg1[%c0, %c0_0] : memref<8x32xf32, #tpu.memory_space<vmem>>, vector<8x32xf32>
    %c0_1 = arith.constant 0 : index
    %c0_2 = arith.constant 0 : index
    %1 = vector.load %arg2[%c0_1, %c0_2] : memref<32x8xf32, #tpu.memory_space<vmem>>, vector<32x8xf32>
    %cst = arith.constant dense<0.000000e+00> : vector<8x8xf32>
    %2 = tpu.matmul %0, %1, %cst {dimension_numbers = #tpu.dot_dimension_numbers<[1], [0], [0], [1], [0, 0, 1, 1], [], []>} : vector<8x32xf32>, vector<32x8xf32>, vector<8x8xf32> -> vector<8x8xf32>
    %c0_3 = arith.constant 0 : index
    %c0_4 = arith.constant 0 : index
    %3 = vector.load %arg3[%c0_3, %c0_4] : memref<1x8xf32, #tpu.memory_space<vmem>>, vector<1x8xf32>
    %4 = vector.broadcast %3 : vector<1x8xf32> to vector<8x8xf32>
    %5 = arith.addf %2, %4 : vector<8x8xf32>
    %c0_5 = arith.constant 0 : index
    %c0_6 = arith.constant 0 : index
    %6 = vector.load %arg4[%c0_5, %c0_6] : memref<8x8xf32, #tpu.memory_space<vmem>>, vector<8x8xf32>
    tpu.vector_store %arg4[%c0_5, %c0_6], %5 {strides = array<i32>} : memref<8x8xf32, #tpu.memory_space<vmem>>, vector<8x8xf32>,
    return
  }
  func.func @transform_0(%arg0: i32) -> (i32, i32) {
    %c0_i32 = arith.constant 0 : i32
    %c0_i32_0 = arith.constant 0 : i32
    return %arg0, %c0_i32 : i32, i32
  }
  func.func @transform_1(%arg0: i32) -> (i32, i32) {
    %c0_i32 = arith.constant 0 : i32
    %c0_i32_0 = arith.constant 0 : i32
    %c0_i32_1 = arith.constant 0 : i32
    return %c0_i32, %c0_i32_0 : i32, i32
  }
  func.func @transform_2(%arg0: i32) -> (i32, i32) {
    %c0_i32 = arith.constant 0 : i32
    %c0_i32_0 = arith.constant 0 : i32
    %c0_i32_1 = arith.constant 0 : i32
    return %c0_i32, %c0_i32_0 : i32, i32
  }
  func.func @transform_3(%arg0: i32) -> (i32, i32) {
    %c0_i32 = arith.constant 0 : i32
    %c0_i32_0 = arith.constant 0 : i32
    return %arg0, %c0_i32 : i32, i32
  }
}

</mosaic_0001>

<llo_original>
// kernel: diag_gaussian_forward.1
$region0: #{diag_gaussian_forward.1}
  #allocation0 [shape = 'u32[]', space=smem, size = 0x4, offset = 0x4, fixed_abs, tag = 'smem constant byte address 0x4 - core index']
  #allocation1 [shape = 'u32[72,128]{1,0:T(1,128)}', space=vmem, size = 0x9000, scoped, tag = 'internal scratch']
  %s0 = inlined_call_operand.vmem [shape: f32[8,32], index: 0, kind: input, shape index: {}]
  %s1 = inlined_call_operand.vmem [shape: f32[32,8], index: 1, kind: input, shape index: {}]
  %s2 = inlined_call_operand.vmem [shape: f32[1,8], index: 2, kind: input, shape index: {}]
  %s3 = inlined_call_operand.hbm [shape: f32[8,8], index: 3, kind: output, shape index: {}]
  %s4 = sld [smem:[#allocation0]]
  $region22: #{diag_gaussian_forward.1} parent=0
    _
  %s6 = ssub.s32 1, %s4
  %s7 = scalar_select 0, %s6, %s4
  $region1: #{diag_gaussian_forward.1} parent=0
    #allocation2 [shape = 'u8[4096]{0}', space=vmem, size = 0x1000, scoped, tag = 'output window, operand 0, single buffered']
    #allocation3 [shape = 's32[1]{0}', space=sflag, size = 0x4, scoped, tag = 'scoped memory for diag_gaussian_forward.1']
    %8 = vsyncpa [#allocation3], 0
    // Predicated region
    $region2: #{diag_gaussian_forward.1} parent=1 // pred_check
      _
    $region3: #{diag_gaussian_forward.1} parent=1 // pred_check_branch
      %10 = sbr.rel (0) target = $region5
    $region4: #{diag_gaussian_forward.1} parent=1 // pred_region
      _
    $region5: #{diag_gaussian_forward.1} parent=1 // pred_fallthru
      _
    // Predicated region
    $region6: #{diag_gaussian_forward.1} parent=1 // pred_check
      _
    $region7: #{diag_gaussian_forward.1} parent=1 // pred_check_branch
      %12 = sbr.rel (0) target = $region9
    $region8: #{diag_gaussian_forward.1} parent=1 // pred_region
      _
    $region9: #{diag_gaussian_forward.1} parent=1 // pred_fallthru
      _
    // Predicated region
    $region10: #{diag_gaussian_forward.1} parent=1 // pred_check
      _
    $region11: #{diag_gaussian_forward.1} parent=1 // pred_check_branch
      %14 = sbr.rel (0) target = $region13
    $region12: #{diag_gaussian_forward.1} parent=1 // pred_region
      _
    $region13: #{diag_gaussian_forward.1} parent=1 // pred_fallthru
      _
    %v15 = vld [vmem:[%s0] sm:$0xff]
    %v16 = vld [vmem:[%s1] sm:$0xff]
    %v17 = vld [vmem:[%s1 + $0x8] sm:$0xff]
    %v18 = vld [vmem:[%s1 + $0x10] sm:$0xff]
    %v19 = vld [vmem:[%s1 + $0x18] sm:$0xff]
    %v20 = vld [vmem:[%s2] sm:$0x1]
    %v22 = vperm.slane %v20, 0
    %vm24 = vcmask 261120
    %v26 = vsel %vm24, %v15, 0
    %28 = vmatpush.msra.mxu0 0.0
    %29 = vmatpush.msra.mxu0 0.0
    %30 = vmatpush.msra.mxu0 0.0
    %31 = vmatpush.msra.mxu0 0.0
    %32 = vmatpush.msra.mxu0 0.0
    %33 = vmatpush.msra.mxu0 0.0
    %34 = vmatpush.msra.mxu0 0.0
    %35 = vmatpush.msra.mxu0 0.0
    %36 = vmatpush.msra.mxu0 0.0
    %37 = vmatpush.msra.mxu0 0.0
    %38 = vmatpush.msra.mxu0 0.0
    %39 = vmatpush.msra.mxu0 0.0
    %40 = vmatpush.msra.mxu0 %v19
    %41 = vmatpush.msra.mxu0 %v18
    %42 = vmatpush.msra.mxu0 %v17
    %43 = vmatpush.msra.mxu0 %v16
    %44 = vmatmul.f32.gmra.mxu0 %v26
    %v45 = vpop.f32.mrf.mxu0
    %v46 = vadd.f32 %v22, %v45
    %47 = vdwg.mxu0
    %vm48 = vcmask 64512
    %49 = vst.msk [vmem:[#allocation2] sm:$0xff] %vm48, %v46
    // Predicated region
    $region14: #{diag_gaussian_forward.1} parent=1 // pred_check
      _
    $region15: #{diag_gaussian_forward.1} parent=1 // pred_check_branch
      %51 = sbr.rel (0) target = $region17
    $region16: #{diag_gaussian_forward.1} parent=1 // pred_region
      %53 = vsyncadd [#allocation3], 0
      %s55 = sshll.u32 [#allocation2], 4
      %s56 = int_to_ptr.vmem [resolvable:$true] %s55
      %s57 = sshll.u32 %s3, 4
      %s58 = int_to_ptr.hbm [resolvable:$true] %s57
      %60 = dma.vmem_to_hbm [thread:$0]  %s56, 128, %s58, [#allocation3]
    $region17: #{diag_gaussian_forward.1} parent=1 // pred_fallthru
      _
    // Predicated region
    $region18: #{diag_gaussian_forward.1} parent=1 // pred_check
      _
    $region19: #{diag_gaussian_forward.1} parent=1 // pred_check_branch
      %62 = sbr.rel (0) target = $region21
    $region20: #{diag_gaussian_forward.1} parent=1 // pred_region
      %64 = dma.done [#allocation3], 128
    $region21: #{diag_gaussian_forward.1} parent=1 // pred_fallthru
      _
    %65 = vsyncpa [#allocation3], 1

</llo_original>
